<compile_context>
chip_gen: v7x
topology: tpu7x:2x2x1
jax: 0.10.0
libtpu: 0.0.40
codegen_flags: <defaults>
</compile_context>

<pallas_src>
import functools

import jax
import jax.numpy as jnp
from jax import lax
from jax.experimental import pallas as pl
from jax.experimental.pallas import tpu as pltpu

_NEG = -1e30   # large finite negative (avoids NaN from (-inf) - (-inf))
_BIG = 1e30    # padding-guard magnitude baked into the extra feature columns


def _round_up(x, m):
    return ((x + m - 1) // m) * m


def _clip_loss_kernel(img_ref, txt_ref, out_ref,
                      rmax_ref, rsum_ref, cmax_ref, csum_ref, acc_ref,
                      *, n_valid, t_r, t_c, r_per_row, needs_mask):
    i = pl.program_id(0)            # image (row) tile index    -- outer axis
    j = pl.program_id(1)            # text  (column) tile index -- inner axis
    ni = pl.num_programs(0)
    nj = pl.num_programs(1)

    # ---- first grid step: zero the scalar loss accumulator ------------------
    @pl.when(jnp.logical_and(i == 0, j == 0))
    def _init_acc():
        acc_ref[0, 0] = jnp.float32(0.0)

    # ---- new image row tile: reset the row online-softmax state -------------
    @pl.when(j == 0)
    def _new_row_tile():
        rmax_ref[...] = jnp.full_like(rmax_ref, _NEG)
        rsum_ref[...] = jnp.zeros_like(rsum_ref)

    # ---- first row tile: init this column tile's online-softmax state -------
    @pl.when(i == 0)
    def _init_col_tile():
        cmax_ref[j] = jnp.full((1, t_c), _NEG, jnp.float32)
        csum_ref[j] = jnp.zeros((1, t_c), jnp.float32)

    # ---- (t_r, t_c) logits tile on the MXU: bf16 operands, f32 accumulate ---
    # img tile: (t_r, D+pad) bf16 (scale pre-folded); txt tile: (D+pad, t_c) bf16.
    logits = jnp.dot(img_ref[...], txt_ref[...],
                     preferred_element_type=jnp.float32)          # (t_r, t_c) f32
    # Padding-guard feature columns already pushed padded-row/col logits to ~-1e30,
    # so no per-tile masking is required here.

    # ---- image -> text direction: online softmax over the column-tile axis --
    tile_rmax = jnp.max(logits, axis=1, keepdims=True)            # (t_r, 1)
    new_rmax = jnp.maximum(rmax_ref[...], tile_rmax)
    rsum_ref[...] = (rsum_ref[...] * jnp.exp(rmax_ref[...] - new_rmax)
                     + jnp.sum(jnp.exp(logits - new_rmax), axis=1, keepdims=True))
    rmax_ref[...] = new_rmax

    # ---- text -> image direction: online softmax over the row-tile axis -----
    tile_cmax = jnp.max(logits, axis=0, keepdims=True)            # (1, t_c)
    old_cmax = cmax_ref[j]
    new_cmax = jnp.maximum(old_cmax, tile_cmax)
    csum_ref[j] = (csum_ref[j] * jnp.exp(old_cmax - new_cmax)
                   + jnp.sum(jnp.exp(logits - new_cmax), axis=0, keepdims=True))
    cmax_ref[j] = new_cmax

    # ---- diagonal tiles: extract target logits from the existing f32 tile ---
    # Tile (i, j) contains diagonal entries iff j is one of the r_per_row column
    # tiles covered by row tile i.
    @pl.when(jnp.logical_and(j >= i * r_per_row, j < (i + 1) * r_per_row))
    def _diag():
        off = (j - i * r_per_row) * t_c            # local_row = local_col + off
        row_io = lax.broadcasted_iota(jnp.int32, (t_r, t_c), 0)
        col_io = lax.broadcasted_iota(jnp.int32, (t_r, t_c), 1)
        dmask = row_io == (col_io + off)
        if needs_mask:
            dmask = jnp.logical_and(dmask, (i * t_r + row_io) < n_valid)
        d = jnp.where(dmask, logits, 0.0)
        # The diagonal is subtracted once for each CE direction.
        acc_ref[0, 0] = acc_ref[0, 0] - 2.0 * jnp.sum(d)

    # ---- finalize image -> text LSE for this row tile -----------------------
    @pl.when(j == nj - 1)
    def _row_done():
        lse = rmax_ref[...] + jnp.log(rsum_ref[...])              # (t_r, 1)
        if needs_mask:
            row_ok = (i * t_r
                      + lax.broadcasted_iota(jnp.int32, (t_r, 1), 0)) < n_valid
            lse = jnp.where(row_ok, lse, 0.0)
        acc_ref[0, 0] = acc_ref[0, 0] + jnp.sum(lse)

    # ---- finalize text -> image LSE for this column tile --------------------
    @pl.when(i == ni - 1)
    def _col_done():
        lse = cmax_ref[j] + jnp.log(csum_ref[j])                  # (1, t_c)
        if needs_mask:
            col_ok = (j * t_c
                      + lax.broadcasted_iota(jnp.int32, (1, t_c), 1)) < n_valid
            lse = jnp.where(col_ok, lse, 0.0)
        acc_ref[0, 0] = acc_ref[0, 0] + jnp.sum(lse)

    # ---- last grid step: average over batch and the two directions ----------
    @pl.when(jnp.logical_and(i == ni - 1, j == nj - 1))
    def _emit():
        out_ref[0, 0] = acc_ref[0, 0] * jnp.float32(0.5 / n_valid)


def clip_loss(image_features, text_features, logit_scale, *,
              block_rows=1024, block_cols=256):
    """ClipLoss.forward equivalent (local_loss=False, world_size=1, single device)."""
    n, d = image_features.shape
    assert text_features.shape == (n, d)

    # ---- tile selection ------------------------------------------------------
    if n <= block_cols:
        t_c = _round_up(n, 8)                  # single tile covers the whole batch
        t_r = t_c
    else:
        assert block_cols % 128 == 0, "block_cols must be a multiple of 128"
        t_c = block_cols
        t_r = min(block_rows, _round_up(n, t_c))
        t_r = max(t_c, (t_r // t_c) * t_c)     # row tile height = multiple of t_c
    assert t_r % t_c == 0
    r_per_row = t_r // t_c

    n_pad = _round_up(n, t_r)
    needs_mask = n_pad != n
    ni = n_pad // t_r
    nj = n_pad // t_c

    scale = jnp.asarray(logit_scale, jnp.float32)

    # ---- precondition features (review items: bf16 inputs, scale folded) -----
    # NOTE: scale is applied before bf16 rounding (PyTorch scales the f32 matmul
    # output); this matches the bf16 reference below and stays within tolerances.
    img = (image_features.astype(jnp.float32) * scale).astype(jnp.bfloat16)
    txt = text_features.astype(jnp.bfloat16)

    if needs_mask:
        img = jnp.pad(img, ((0, n_pad - n), (0, 0)))
        txt = jnp.pad(txt, ((0, n_pad - n), (0, 0)))
        # Two padding-guard feature columns: the matmul itself drives every logit
        # involving a padded row or padded column to ~-1e30, so the kernel never
        # pays a per-tile padding mask.
        #   extra logit = imgA_i*txtA_j + imgB_i*txtB_j
        #               = -BIG*[i padded] - BIG*[j padded]   (exactly 0 otherwise)
        is_pad = (jnp.arange(n_pad) >= n).astype(jnp.float32)
        img_extra = jnp.stack([is_pad, jnp.full((n_pad,), -_BIG, jnp.float32)],
                              axis=1).astype(jnp.bfloat16)
        txt_extra = jnp.stack([jnp.full((n_pad,), -_BIG, jnp.float32), is_pad],
                              axis=1).astype(jnp.bfloat16)
        img = jnp.concatenate([img, img_extra], axis=1)
        txt = jnp.concatenate([txt, txt_extra], axis=1)

    d_eff = img.shape[1]
    # Pre-transpose text so the contraction dim lands on sublanes (no per-tile
    # transpose inside the kernel).
    txt_t = txt.T                                              # (d_eff, n_pad)

    kernel = functools.partial(_clip_loss_kernel, n_valid=n, t_r=t_r, t_c=t_c,
                               r_per_row=r_per_row, needs_mask=needs_mask)

    out = pl.pallas_call(
        kernel,
        out_shape=jax.ShapeDtypeStruct((1, 1), jnp.float32),
        grid_spec=pltpu.PrefetchScalarGridSpec(
            num_scalar_prefetch=0,
            grid=(ni, nj),
            in_specs=[
                pl.BlockSpec((t_r, d_eff), lambda i, j: (i, 0)),   # scaled bf16 image rows
                pl.BlockSpec((d_eff, t_c), lambda i, j: (0, j)),   # bf16 text cols (pre-T)
            ],
            out_specs=pl.BlockSpec((1, 1), lambda i, j: (0, 0),
                                   memory_space=pltpu.MemorySpace.SMEM),
            scratch_shapes=[
                pltpu.VMEM((t_r, 1), jnp.float32),          # running row max
                pltpu.VMEM((t_r, 1), jnp.float32),          # running row sum-exp
                pltpu.VMEM((nj, 1, t_c), jnp.float32),      # per-col-tile running max
                pltpu.VMEM((nj, 1, t_c), jnp.float32),      # per-col-tile running sum-exp
                pltpu.SMEM((1, 1), jnp.float32),            # scalar loss accumulator
            ],
        ),
        compiler_params=pltpu.CompilerParams(
            # Column statistics accumulate across the row-tile axis and row
            # statistics across the column-tile axis, so both grid axes run
            # sequentially on one core.
            # TODO(synk): v7x megacore split (parallel column-tile axis with
            # per-core row-LSE partials merged in the wrapper) not implemented.
            dimension_semantics=("arbitrary", "arbitrary"),
            vmem_limit_bytes=48 * 1024 * 1024,
        ),
    )(img, txt_t)
    return out[0, 0]


def _clip_loss_ref(image_features, text_features, logit_scale):
    # Exact f32 semantics of the PyTorch module (world_size == 1).
    logits = logit_scale * (image_features.astype(jnp.float32)
                            @ text_features.astype(jnp.float32).T)
    n = logits.shape[0]
    idx = jnp.arange(n)

    def ce(l):
        return jnp.mean(jax.nn.logsumexp(l, axis=1) - l[idx, idx])

    return 0.5 * (ce(logits) + ce(logits.T))


def _clip_loss_ref_bf16(image_features, text_features, logit_scale):
    # Mirrors the kernel's precision: scale folded into the image features and
    # both matmul operands rounded to bf16 (f32 accumulation).
    img = (image_features.astype(jnp.float32) * logit_scale).astype(jnp.bfloat16)
    txt = text_features.astype(jnp.bfloat16)
    logits = img.astype(jnp.float32) @ txt.astype(jnp.float32).T
    n = logits.shape[0]
    idx = jnp.arange(n)

    def ce(l):
        return jnp.mean(jax.nn.logsumexp(l, axis=1) - l[idx, idx])

    return 0.5 * (ce(logits) + ce(logits.T))


if __name__ == "__main__":
    key = jax.random.PRNGKey(0)
    k1, k2, k3, k4 = jax.random.split(key, 4)
    logit_scale = jnp.float32(1.0 / 0.07)   # open_clip init temperature

    # Case 1: tiny batch (N=12, not a multiple of 8) -> single padded tile.
    N1, D1 = 12, 64
    img1 = jax.random.normal(k1, (N1, D1), dtype=jnp.float32)
    txt1 = jax.random.normal(k2, (N1, D1), dtype=jnp.float32)
    loss1 = jax.block_until_ready(clip_loss(img1, txt1, logit_scale))
    ref1b = _clip_loss_ref_bf16(img1, txt1, logit_scale)
    ref1f = _clip_loss_ref(img1, txt1, logit_scale)
    assert bool(jnp.isfinite(loss1)), loss1
    assert jnp.allclose(loss1, ref1b, rtol=5e-3, atol=5e-3), (loss1, ref1b)
    assert jnp.allclose(loss1, ref1f, rtol=5e-2, atol=5e-2), (loss1, ref1f)

    # Case 2: multi-tile grid with asymmetric tiles (t_r=256, t_c=128), padding
    # (N=300 padded to 512) including a fully-padded column tile, and
    # accumulation across both grid axes.
    N2, D2 = 300, 64
    img2 = jax.random.normal(k3, (N2, D2), dtype=jnp.float32)
    txt2 = jax.random.normal(k4, (N2, D2), dtype=jnp.float32)
    loss2 = jax.block_until_ready(
        clip_loss(img2, txt2, logit_scale, block_rows=256, block_cols=128))
    ref2b = _clip_loss_ref_bf16(img2, txt2, logit_scale)
    ref2f = _clip_loss_ref(img2, txt2, logit_scale)
    assert bool(jnp.isfinite(loss2)), loss2
    assert jnp.allclose(loss2, ref2b, rtol=5e-3, atol=5e-3), (loss2, ref2b)
    assert jnp.allclose(loss2, ref2f, rtol=5e-2, atol=5e-2), (loss2, ref2f)

    print("KERNEL_OK")
</pallas_src>

<mosaic_0001>
module attributes {stable_mosaic.version = 11 : i64} {
  func.func @_clip_loss_kernel(%arg0: i32, %arg1: i32, %arg2: memref<16x66xbf16, #tpu.memory_space<vmem>>, %arg3: memref<66x16xbf16, #tpu.memory_space<vmem>>, %arg4: memref<1x1xf32, #tpu.memory_space<smem>>, %arg5: memref<16x1xf32, #tpu.memory_space<vmem>>, %arg6: memref<16x1xf32, #tpu.memory_space<vmem>>, %arg7: memref<1x1x16xf32, #tpu.memory_space<vmem>>, %arg8: memref<1x1x16xf32, #tpu.memory_space<vmem>>, %arg9: memref<1x1xf32, #tpu.memory_space<smem>>) attributes {dimension_semantics = [#tpu.dimension_semantics<arbitrary>, #tpu.dimension_semantics<arbitrary>], iteration_bounds = array<i64: 1, 1>, scalar_prefetch = 0 : i64, scratch_operands = 5 : i64, tpu.core_type = #tpu.core_type<tc>, window_params = [{transform_indices = @transform_0, window_bounds = array<i64: 16, 66>}, {transform_indices = @transform_1, window_bounds = array<i64: 66, 16>}, {transform_indices = @transform_2, window_bounds = array<i64: 1, 1>}]} {
    %c0_i32 = arith.constant 0 : i32
    %0 = arith.cmpi eq, %arg0, %c0_i32 : i32
    %c0_i32_0 = arith.constant 0 : i32
    %1 = arith.cmpi eq, %arg1, %c0_i32_0 : i32
    %2 = arith.andi %0, %1 : i1
    %3 = arith.extui %2 : i1 to i32
    %c0_i32_1 = arith.constant 0 : i32
    %4 = arith.cmpi ne, %3, %c0_i32_1 : i32
    scf.if %4 {
      %cst_41 = arith.constant 0.000000e+00 : f32
      %c0_42 = arith.constant 0 : index
      %c0_43 = arith.constant 0 : index
      %76 = memref.load %arg9[%c0_42, %c0_43] : memref<1x1xf32, #tpu.memory_space<smem>>
      memref.store %cst_41, %arg9[%c0_42, %c0_43] : memref<1x1xf32, #tpu.memory_space<smem>>
    } else {
    }
    %c0_i32_2 = arith.constant 0 : i32
    %5 = arith.cmpi eq, %arg1, %c0_i32_2 : i32
    %6 = arith.extui %5 : i1 to i32
    %c0_i32_3 = arith.constant 0 : i32
    %7 = arith.cmpi ne, %6, %c0_i32_3 : i32
    scf.if %7 {
      %cst_41 = arith.constant -1.000000e+30 : f32
      %76 = vector.broadcast %cst_41 : f32 to vector<16x1xf32>
      %c0_42 = arith.constant 0 : index
      %c0_43 = arith.constant 0 : index
      %77 = vector.load %arg5[%c0_42, %c0_43] : memref<16x1xf32, #tpu.memory_space<vmem>>, vector<16x1xf32>
      tpu.vector_store %arg5[%c0_42, %c0_43], %76 {strides = array<i32>} : memref<16x1xf32, #tpu.memory_space<vmem>>, vector<16x1xf32>,
      %cst_44 = arith.constant 0.000000e+00 : f32
      %78 = vector.broadcast %cst_44 : f32 to vector<16x1xf32>
      %c0_45 = arith.constant 0 : index
      %c0_46 = arith.constant 0 : index
      %79 = vector.load %arg6[%c0_45, %c0_46] : memref<16x1xf32, #tpu.memory_space<vmem>>, vector<16x1xf32>
      tpu.vector_store %arg6[%c0_45, %c0_46], %78 {strides = array<i32>} : memref<16x1xf32, #tpu.memory_space<vmem>>, vector<16x1xf32>,
    } else {
    }
    %c0_i32_4 = arith.constant 0 : i32
    %8 = arith.cmpi eq, %arg0, %c0_i32_4 : i32
    %9 = arith.extui %8 : i1 to i32
    %c0_i32_5 = arith.constant 0 : i32
    %10 = arith.cmpi ne, %9, %c0_i32_5 : i32
    scf.if %10 {
      %cst_41 = arith.constant -1.000000e+30 : f32
      %76 = vector.broadcast %cst_41 : f32 to vector<1x16xf32>
      %77 = arith.index_cast %arg1 : i32 to index
      %c0_42 = arith.constant 0 : index
      %c0_43 = arith.constant 0 : index
      %78 = vector.load %arg7[%77, %c0_42, %c0_43] : memref<1x1x16xf32, #tpu.memory_space<vmem>>, vector<1x1x16xf32>
      %79 = vector.shape_cast %78 : vector<1x1x16xf32> to vector<1x16xf32>
      %80 = vector.shape_cast %76 : vector<1x16xf32> to vector<1x1x16xf32>
      tpu.vector_store %arg7[%77, %c0_42, %c0_43], %80 {strides = array<i32>} : memref<1x1x16xf32, #tpu.memory_space<vmem>>, vector<1x1x16xf32>,
      %cst_44 = arith.constant 0.000000e+00 : f32
      %81 = vector.broadcast %cst_44 : f32 to vector<1x16xf32>
      %82 = arith.index_cast %arg1 : i32 to index
      %c0_45 = arith.constant 0 : index
      %c0_46 = arith.constant 0 : index
      %83 = vector.load %arg8[%82, %c0_45, %c0_46] : memref<1x1x16xf32, #tpu.memory_space<vmem>>, vector<1x1x16xf32>
      %84 = vector.shape_cast %83 : vector<1x1x16xf32> to vector<1x16xf32>
      %85 = vector.shape_cast %81 : vector<1x16xf32> to vector<1x1x16xf32>
      tpu.vector_store %arg8[%82, %c0_45, %c0_46], %85 {strides = array<i32>} : memref<1x1x16xf32, #tpu.memory_space<vmem>>, vector<1x1x16xf32>,
    } else {
    }
    %c0 = arith.constant 0 : index
    %c0_6 = arith.constant 0 : index
    %11 = vector.load %arg2[%c0, %c0_6] : memref<16x66xbf16, #tpu.memory_space<vmem>>, vector<16x66xbf16>
    %c0_7 = arith.constant 0 : index
    %c0_8 = arith.constant 0 : index
    %12 = vector.load %arg3[%c0_7, %c0_8] : memref<66x16xbf16, #tpu.memory_space<vmem>>, vector<66x16xbf16>
    %cst = arith.constant dense<0.000000e+00> : vector<16x16xf32>
    %13 = tpu.matmul %11, %12, %cst {dimension_numbers = #tpu.dot_dimension_numbers<[1], [0], [0], [1], [0, 0, 1, 1], [], []>} : vector<16x66xbf16>, vector<66x16xbf16>, vector<16x16xf32> -> vector<16x16xf32>
    %cst_9 = arith.constant dense<0xFF800000> : vector<16xf32>
    %14 = vector.multi_reduction <maximumf>, %13, %cst_9 [1] : vector<16x16xf32> to vector<16xf32>
    %15 = vector.shape_cast %14 : vector<16xf32> to vector<16x1xf32>
    %c0_10 = arith.constant 0 : index
    %c0_11 = arith.constant 0 : index
    %16 = vector.load %arg5[%c0_10, %c0_11] : memref<16x1xf32, #tpu.memory_space<vmem>>, vector<16x1xf32>
    %17 = arith.maximumf %16, %15 : vector<16x1xf32>
    %c0_12 = arith.constant 0 : index
    %c0_13 = arith.constant 0 : index
    %18 = vector.load %arg6[%c0_12, %c0_13] : memref<16x1xf32, #tpu.memory_space<vmem>>, vector<16x1xf32>
    %c0_14 = arith.constant 0 : index
    %c0_15 = arith.constant 0 : index
    %19 = vector.load %arg5[%c0_14, %c0_15] : memref<16x1xf32, #tpu.memory_space<vmem>>, vector<16x1xf32>
    %20 = arith.subf %19, %17 : vector<16x1xf32>
    %21 = math.exp %20 : vector<16x1xf32>
    %22 = arith.mulf %18, %21 : vector<16x1xf32>
    %23 = vector.broadcast %17 : vector<16x1xf32> to vector<16x16xf32>
    %24 = arith.subf %13, %23 : vector<16x16xf32>
    %25 = math.exp %24 : vector<16x16xf32>
    %cst_16 = arith.constant dense<0.000000e+00> : vector<16xf32>
    %26 = vector.multi_reduction <add>, %25, %cst_16 [1] : vector<16x16xf32> to vector<16xf32>
    %27 = vector.shape_cast %26 : vector<16xf32> to vector<16x1xf32>
    %28 = arith.addf %22, %27 : vector<16x1xf32>
    %c0_17 = arith.constant 0 : index
    %c0_18 = arith.constant 0 : index
    %29 = vector.load %arg6[%c0_17, %c0_18] : memref<16x1xf32, #tpu.memory_space<vmem>>, vector<16x1xf32>
    tpu.vector_store %arg6[%c0_17, %c0_18], %28 {strides = array<i32>} : memref<16x1xf32, #tpu.memory_space<vmem>>, vector<16x1xf32>,
    %c0_19 = arith.constant 0 : index
    %c0_20 = arith.constant 0 : index
    %30 = vector.load %arg5[%c0_19, %c0_20] : memref<16x1xf32, #tpu.memory_space<vmem>>, vector<16x1xf32>
    tpu.vector_store %arg5[%c0_19, %c0_20], %17 {strides = array<i32>} : memref<16x1xf32, #tpu.memory_space<vmem>>, vector<16x1xf32>,
    %cst_21 = arith.constant dense<0xFF800000> : vector<16xf32>
    %31 = vector.multi_reduction <maximumf>, %13, %cst_21 [0] : vector<16x16xf32> to vector<16xf32>
    %32 = vector.shape_cast %31 : vector<16xf32> to vector<1x16xf32>
    %33 = arith.index_cast %arg1 : i32 to index
    %c0_22 = arith.constant 0 : index
    %c0_23 = arith.constant 0 : index
    %34 = vector.load %arg7[%33, %c0_22, %c0_23] : memref<1x1x16xf32, #tpu.memory_space<vmem>>, vector<1x1x16xf32>
    %35 = vector.shape_cast %34 : vector<1x1x16xf32> to vector<1x16xf32>
    %36 = arith.maximumf %35, %32 : vector<1x16xf32>
    %37 = arith.index_cast %arg1 : i32 to index
    %c0_24 = arith.constant 0 : index
    %c0_25 = arith.constant 0 : index
    %38 = vector.load %arg8[%37, %c0_24, %c0_25] : memref<1x1x16xf32, #tpu.memory_space<vmem>>, vector<1x1x16xf32>
    %39 = vector.shape_cast %38 : vector<1x1x16xf32> to vector<1x16xf32>
    %40 = arith.subf %35, %36 : vector<1x16xf32>
    %41 = math.exp %40 : vector<1x16xf32>
    %42 = arith.mulf %39, %41 : vector<1x16xf32>
    %43 = vector.broadcast %36 : vector<1x16xf32> to vector<16x16xf32>
    %44 = arith.subf %13, %43 : vector<16x16xf32>
    %45 = math.exp %44 : vector<16x16xf32>
    %cst_26 = arith.constant dense<0.000000e+00> : vector<16xf32>
    %46 = vector.multi_reduction <add>, %45, %cst_26 [0] : vector<16x16xf32> to vector<16xf32>
    %47 = vector.shape_cast %46 : vector<16xf32> to vector<1x16xf32>
    %48 = arith.addf %42, %47 : vector<1x16xf32>
    %49 = arith.index_cast %arg1 : i32 to index
    %c0_27 = arith.constant 0 : index
    %c0_28 = arith.constant 0 : index
    %50 = vector.load %arg8[%49, %c0_27, %c0_28] : memref<1x1x16xf32, #tpu.memory_space<vmem>>, vector<1x1x16xf32>
    %51 = vector.shape_cast %50 : vector<1x1x16xf32> to vector<1x16xf32>
    %52 = vector.shape_cast %48 : vector<1x16xf32> to vector<1x1x16xf32>
    tpu.vector_store %arg8[%49, %c0_27, %c0_28], %52 {strides = array<i32>} : memref<1x1x16xf32, #tpu.memory_space<vmem>>, vector<1x1x16xf32>,
    %53 = arith.index_cast %arg1 : i32 to index
    %c0_29 = arith.constant 0 : index
    %c0_30 = arith.constant 0 : index
    %54 = vector.load %arg7[%53, %c0_29, %c0_30] : memref<1x1x16xf32, #tpu.memory_space<vmem>>, vector<1x1x16xf32>
    %55 = vector.shape_cast %54 : vector<1x1x16xf32> to vector<1x16xf32>
    %56 = vector.shape_cast %36 : vector<1x16xf32> to vector<1x1x16xf32>
    tpu.vector_store %arg7[%53, %c0_29, %c0_30], %56 {strides = array<i32>} : memref<1x1x16xf32, #tpu.memory_space<vmem>>, vector<1x1x16xf32>,
    %c1_i32 = arith.constant 1 : i32
    %57 = arith.muli %arg0, %c1_i32 : i32
    %58 = arith.cmpi sge, %arg1, %57 : i32
    %c1_i32_31 = arith.constant 1 : i32
    %59 = arith.addi %arg0, %c1_i32_31 : i32
    %c1_i32_32 = arith.constant 1 : i32
    %60 = arith.muli %59, %c1_i32_32 : i32
    %61 = arith.cmpi slt, %arg1, %60 : i32
    %62 = arith.andi %58, %61 : i1
    %63 = arith.extui %62 : i1 to i32
    %c0_i32_33 = arith.constant 0 : i32
    %64 = arith.cmpi ne, %63, %c0_i32_33 : i32
    scf.if %64 {
      %c1_i32_41 = arith.constant 1 : i32
      %76 = arith.muli %arg0, %c1_i32_41 : i32
      %77 = arith.subi %arg1, %76 : i32
      %c16_i32 = arith.constant 16 : i32
      %78 = arith.muli %77, %c16_i32 : i32
      %79 = tpu.iota {dimensions = array<i32: 0>} : vector<16x16xi32>
      %80 = tpu.iota {dimensions = array<i32: 1>} : vector<16x16xi32>
      %81 = vector.broadcast %78 : i32 to vector<16x16xi32>
      %82 = arith.addi %80, %81 : vector<16x16xi32>
      %83 = arith.cmpi eq, %79, %82 : vector<16x16xi32>
      %c16_i32_42 = arith.constant 16 : i32
      %84 = arith.muli %arg0, %c16_i32_42 : i32
      %85 = vector.broadcast %84 : i32 to vector<16x16xi32>
      %86 = arith.addi %85, %79 : vector<16x16xi32>
      %c12_i32 = arith.constant 12 : i32
      %87 = vector.broadcast %c12_i32 : i32 to vector<16x16xi32>
      %88 = arith.cmpi slt, %86, %87 : vector<16x16xi32>
      %89 = arith.andi %83, %88 : vector<16x16xi1>
      %cst_43 = arith.constant 0.000000e+00 : f32
      %90 = vector.broadcast %cst_43 : f32 to vector<16x16xf32>
      %91 = arith.select %89, %13, %90 : vector<16x16xi1>, vector<16x16xf32>
      %c0_44 = arith.constant 0 : index
      %c0_45 = arith.constant 0 : index
      %92 = memref.load %arg9[%c0_44, %c0_45] : memref<1x1xf32, #tpu.memory_space<smem>>
      %93 = vector.shape_cast %91 : vector<16x16xf32> to vector<1x16x16xf32>
      %cst_46 = arith.constant dense<0.000000e+00> : vector<1xf32>
      %94 = vector.multi_reduction <add>, %93, %cst_46 [1, 2] : vector<1x16x16xf32> to vector<1xf32>
      %95 = vector.shape_cast %94 : vector<1xf32> to vector<1x1x1xf32>
      %96 = vector.extract %95[0, 0, 0] : f32 from vector<1x1x1xf32>
      %cst_47 = arith.constant 2.000000e+00 : f32
      %97 = arith.mulf %cst_47, %96 : f32
      %98 = arith.subf %92, %97 : f32
      %c0_48 = arith.constant 0 : index
      %c0_49 = arith.constant 0 : index
      %99 = memref.load %arg9[%c0_48, %c0_49] : memref<1x1xf32, #tpu.memory_space<smem>>
      memref.store %98, %arg9[%c0_48, %c0_49] : memref<1x1xf32, #tpu.memory_space<smem>>
    } else {
    }
    %c0_i32_34 = arith.constant 0 : i32
    %65 = arith.cmpi eq, %arg1, %c0_i32_34 : i32
    %66 = arith.extui %65 : i1 to i32
    %c0_i32_35 = arith.constant 0 : i32
    %67 = arith.cmpi ne, %66, %c0_i32_35 : i32
    scf.if %67 {
      %c0_41 = arith.constant 0 : index
      %c0_42 = arith.constant 0 : index
      %76 = vector.load %arg5[%c0_41, %c0_42] : memref<16x1xf32, #tpu.memory_space<vmem>>, vector<16x1xf32>
      %c0_43 = arith.constant 0 : index
      %c0_44 = arith.constant 0 : index
      %77 = vector.load %arg6[%c0_43, %c0_44] : memref<16x1xf32, #tpu.memory_space<vmem>>, vector<16x1xf32>
      %78 = math.log %77 : vector<16x1xf32>
      %79 = arith.addf %76, %78 : vector<16x1xf32>
      %c16_i32 = arith.constant 16 : i32
      %80 = arith.muli %arg0, %c16_i32 : i32
      %81 = tpu.iota {dimensions = array<i32: 0>} : vector<16x1xi32>
      %82 = vector.broadcast %80 : i32 to vector<16x1xi32>
      %83 = arith.addi %82, %81 : vector<16x1xi32>
      %c12_i32 = arith.constant 12 : i32
      %84 = vector.broadcast %c12_i32 : i32 to vector<16x1xi32>
      %85 = arith.cmpi slt, %83, %84 : vector<16x1xi32>
      %cst_45 = arith.constant 0.000000e+00 : f32
      %86 = vector.broadcast %cst_45 : f32 to vector<16x1xf32>
      %87 = arith.select %85, %79, %86 : vector<16x1xi1>, vector<16x1xf32>
      %c0_46 = arith.constant 0 : index
      %c0_47 = arith.constant 0 : index
      %88 = memref.load %arg9[%c0_46, %c0_47] : memref<1x1xf32, #tpu.memory_space<smem>>
      %89 = vector.shape_cast %87 : vector<16x1xf32> to vector<1x16x1xf32>
      %cst_48 = arith.constant dense<0.000000e+00> : vector<1xf32>
      %90 = vector.multi_reduction <add>, %89, %cst_48 [1, 2] : vector<1x16x1xf32> to vector<1xf32>
      %91 = vector.shape_cast %90 : vector<1xf32> to vector<1x1x1xf32>
      %92 = vector.extract %91[0, 0, 0] : f32 from vector<1x1x1xf32>
      %93 = arith.addf %88, %92 : f32
      %c0_49 = arith.constant 0 : index
      %c0_50 = arith.constant 0 : index
      %94 = memref.load %arg9[%c0_49, %c0_50] : memref<1x1xf32, #tpu.memory_space<smem>>
      memref.store %93, %arg9[%c0_49, %c0_50] : memref<1x1xf32, #tpu.memory_space<smem>>
    } else {
    }
    %c0_i32_36 = arith.constant 0 : i32
    %68 = arith.cmpi eq, %arg0, %c0_i32_36 : i32
    %69 = arith.extui %68 : i1 to i32
    %c0_i32_37 = arith.constant 0 : i32
    %70 = arith.cmpi ne, %69, %c0_i32_37 : i32
    scf.if %70 {
      %76 = arith.index_cast %arg1 : i32 to index
      %c0_41 = arith.constant 0 : index
      %c0_42 = arith.constant 0 : index
      %77 = vector.load %arg7[%76, %c0_41, %c0_42] : memref<1x1x16xf32, #tpu.memory_space<vmem>>, vector<1x1x16xf32>
      %78 = vector.shape_cast %77 : vector<1x1x16xf32> to vector<1x16xf32>
      %79 = arith.index_cast %arg1 : i32 to index
      %c0_43 = arith.constant 0 : index
      %c0_44 = arith.constant 0 : index
      %80 = vector.load %arg8[%79, %c0_43, %c0_44] : memref<1x1x16xf32, #tpu.memory_space<vmem>>, vector<1x1x16xf32>
      %81 = vector.shape_cast %80 : vector<1x1x16xf32> to vector<1x16xf32>
      %82 = math.log %81 : vector<1x16xf32>
      %83 = arith.addf %78, %82 : vector<1x16xf32>
      %c16_i32 = arith.constant 16 : i32
      %84 = arith.muli %arg1, %c16_i32 : i32
      %85 = tpu.iota {dimensions = array<i32: 1>} : vector<1x16xi32>
      %86 = vector.broadcast %84 : i32 to vector<1x16xi32>
      %87 = arith.addi %86, %85 : vector<1x16xi32>
      %c12_i32 = arith.constant 12 : i32
      %88 = vector.broadcast %c12_i32 : i32 to vector<1x16xi32>
      %89 = arith.cmpi slt, %87, %88 : vector<1x16xi32>
      %cst_45 = arith.constant 0.000000e+00 : f32
      %90 = vector.broadcast %cst_45 : f32 to vector<1x16xf32>
      %91 = arith.select %89, %83, %90 : vector<1x16xi1>, vector<1x16xf32>
      %c0_46 = arith.constant 0 : index
      %c0_47 = arith.constant 0 : index
      %92 = memref.load %arg9[%c0_46, %c0_47] : memref<1x1xf32, #tpu.memory_space<smem>>
      %93 = vector.shape_cast %91 : vector<1x16xf32> to vector<1x1x16xf32>
      %cst_48 = arith.constant dense<0.000000e+00> : vector<1xf32>
      %94 = vector.multi_reduction <add>, %93, %cst_48 [1, 2] : vector<1x1x16xf32> to vector<1xf32>
      %95 = vector.shape_cast %94 : vector<1xf32> to vector<1x1x1xf32>
      %96 = vector.extract %95[0, 0, 0] : f32 from vector<1x1x1xf32>
      %97 = arith.addf %92, %96 : f32
      %c0_49 = arith.constant 0 : index
      %c0_50 = arith.constant 0 : index
      %98 = memref.load %arg9[%c0_49, %c0_50] : memref<1x1xf32, #tpu.memory_space<smem>>
      memref.store %97, %arg9[%c0_49, %c0_50] : memref<1x1xf32, #tpu.memory_space<smem>>
    } else {
    }
    %c0_i32_38 = arith.constant 0 : i32
    %71 = arith.cmpi eq, %arg0, %c0_i32_38 : i32
    %c0_i32_39 = arith.constant 0 : i32
    %72 = arith.cmpi eq, %arg1, %c0_i32_39 : i32
    %73 = arith.andi %71, %72 : i1
    %74 = arith.extui %73 : i1 to i32
    %c0_i32_40 = arith.constant 0 : i32
    %75 = arith.cmpi ne, %74, %c0_i32_40 : i32
    scf.if %75 {
      %c0_41 = arith.constant 0 : index
      %c0_42 = arith.constant 0 : index
      %76 = memref.load %arg9[%c0_41, %c0_42] : memref<1x1xf32, #tpu.memory_space<smem>>
      %cst_43 = arith.constant 0.0416666679 : f32
      %77 = arith.mulf %76, %cst_43 : f32
      %c0_44 = arith.constant 0 : index
      %c0_45 = arith.constant 0 : index
      %78 = memref.load %arg4[%c0_44, %c0_45] : memref<1x1xf32, #tpu.memory_space<smem>>
      memref.store %77, %arg4[%c0_44, %c0_45] : memref<1x1xf32, #tpu.memory_space<smem>>
    } else {
    }
    return
  }
  func.func @transform_0(%arg0: i32, %arg1: i32) -> (i32, i32) {
    %c0_i32 = arith.constant 0 : i32
    %c0_i32_0 = arith.constant 0 : i32
    return %arg0, %c0_i32 : i32, i32
  }
  func.func @transform_1(%arg0: i32, %arg1: i32) -> (i32, i32) {
    %c0_i32 = arith.constant 0 : i32
    %c0_i32_0 = arith.constant 0 : i32
    return %c0_i32, %arg1 : i32, i32
  }
  func.func @transform_2(%arg0: i32, %arg1: i32) -> (i32, i32) {
    %c0_i32 = arith.constant 0 : i32
    %c0_i32_0 = arith.constant 0 : i32
    %c0_i32_1 = arith.constant 0 : i32
    return %c0_i32, %c0_i32_0 : i32, i32
  }
}

</mosaic_0001>

<llo_original>
// kernel: tpu_custom_call.1
$region0: #{tpu_custom_call.1}
  #allocation0 [shape = 'u32[]', space=smem, size = 0x4, offset = 0x4, fixed_abs, tag = 'smem constant byte address 0x4 - core index']
  #allocation1 [shape = 'u32[144,128]{1,0:T(1,128)}', space=vmem, size = 0x12000, scoped, tag = 'internal scratch']
  #allocation2 [shape = 'f32[16,1]{1,0:T(8,128)}', space=vmem, size = 0x2000, scoped, tag = 'scratch operand']
  #allocation3 [shape = 'f32[16,1]{1,0:T(8,128)}', space=vmem, size = 0x2000, scoped, tag = 'scratch operand']
  #allocation4 [shape = 'f32[1,1,16]{2,1,0:T(1,128)}', space=vmem, size = 0x200, scoped, tag = 'scratch operand']
  #allocation5 [shape = 'f32[1,1,16]{2,1,0:T(1,128)}', space=vmem, size = 0x200, scoped, tag = 'scratch operand']
  #allocation6 [shape = 'f32[1,1]{1,0:T(1,128)}', space=smem, size = 0x200, scoped, tag = 'scratch operand']
  %s0 = inlined_call_operand.vmem [shape: bf16[16,66], index: 0, kind: input, shape index: {}]
  %s1 = inlined_call_operand.vmem [shape: bf16[66,16], index: 1, kind: input, shape index: {}]
  %s2 = inlined_call_operand.hbm [shape: f32[1,1], index: 2, kind: output, shape index: {}]
  %s3 = sld [smem:[#allocation0]]
  $region46: #{tpu_custom_call.1} parent=0
    _
  %s5 = ssub.s32 1, %s3
  %s6 = scalar_select 0, %s5, %s3
  $region1: #{tpu_custom_call.1} parent=0
    #allocation7 [shape = 'u8[512]{0}', space=smem, size = 0x200, scoped, tag = 'output window, operand 0, single buffered']
    #allocation8 [shape = 's32[1]{0}', space=sflag, size = 0x4, scoped, tag = 'scoped memory for tpu_custom_call.1']
    %7 = vsyncpa [#allocation8], 0
    // Predicated region
    $region2: #{tpu_custom_call.1} parent=1 // pred_check
      _
    $region3: #{tpu_custom_call.1} parent=1 // pred_check_branch
      %9 = sbr.rel (0) target = $region5
    $region4: #{tpu_custom_call.1} parent=1 // pred_region
      _
    $region5: #{tpu_custom_call.1} parent=1 // pred_fallthru
      _
    // Predicated region
    $region6: #{tpu_custom_call.1} parent=1 // pred_check
      _
    $region7: #{tpu_custom_call.1} parent=1 // pred_check_branch
      %11 = sbr.rel (0) target = $region9
    $region8: #{tpu_custom_call.1} parent=1 // pred_region
      _
    $region9: #{tpu_custom_call.1} parent=1 // pred_fallthru
      _
    %p13 = scmp.eq.s32.totalorder 0, 0
    %p14 = scmp.eq.s32.totalorder 0, 0
    %p15 = pnand %p13, %p14
    %p16 = pneg %p15
    // Predicated region
    $region10: #{tpu_custom_call.1} parent=1 // pred_check
      _
    $region11: #{tpu_custom_call.1} parent=1 // pred_check_branch
      %18 = sbr.rel (%p15) target = $region13
    $region12: #{tpu_custom_call.1} parent=1 // pred_region
      %s19 = scalar_lea.smem [#allocation6], 0
      %20 = sst [smem:[%s19]] 0.0
    $region13: #{tpu_custom_call.1} parent=1 // pred_fallthru
      _
    // Predicated region
    $region14: #{tpu_custom_call.1} parent=1 // pred_check
      %p21 = pneg %p14
    $region15: #{tpu_custom_call.1} parent=1 // pred_check_branch
      %23 = sbr.rel (%p21) target = $region17
    $region16: #{tpu_custom_call.1} parent=1 // pred_region
      %vm24 = vcmask 7168
      %25 = vst.msk [vmem:[#allocation2] sm:$0xff] %vm24, -1e+30
      %26 = vst.msk [vmem:[#allocation2 + $0x8] sm:$0xff] %vm24, -1e+30
      %27 = vst.msk [vmem:[#allocation3] sm:$0xff] %vm24, 0.0
      %28 = vst.msk [vmem:[#allocation3 + $0x8] sm:$0xff] %vm24, 0.0
    $region17: #{tpu_custom_call.1} parent=1 // pred_fallthru
      _
    // Predicated region
    $region18: #{tpu_custom_call.1} parent=1 // pred_check
      %p29 = pneg %p13
    $region19: #{tpu_custom_call.1} parent=1 // pred_check_branch
      %31 = sbr.rel (%p29) target = $region21
    $region20: #{tpu_custom_call.1} parent=1 // pred_region
      %vm32 = vcmask 122880
      %33 = vst.msk [vmem:[#allocation4] sm:$0x1] %vm32, -1e+30
      %34 = vst.msk [vmem:[#allocation5] sm:$0x1] %vm32, 0.0
    $region21: #{tpu_custom_call.1} parent=1 // pred_fallthru
      _
    %v35 = vld [vmem:[%s0] sm:$0xf]
    %v36 = vld [vmem:[%s0 + $0x4] sm:$0xf]
    %v37 = vld [vmem:[%s1] sm:$0xf]
    %v38 = vld [vmem:[%s1 + $0x4] sm:$0xf]
    %v39 = vld [vmem:[%s1 + $0x8] sm:$0xf]
    %v40 = vld [vmem:[%s1 + $0xc] sm:$0xf]
    %v41 = vld [vmem:[%s1 + $0x10] sm:$0xf]
    %v42 = vld [vmem:[%s1 + $0x14] sm:$0xf]
    %v43 = vld [vmem:[%s1 + $0x18] sm:$0xf]
    %v44 = vld [vmem:[%s1 + $0x1c] sm:$0xf]
    %v45 = vld [vmem:[%s1 + $0x20] sm:$0x1]
    %v48 = vunpack.c.l.b16 %v35
    %v49 = vunpack.c.l.b16 %v36
    %v50 = vpack.c.b16 %v49, %v48
    %v60 = vunpack.c.l.b16 %v37
    %v61 = vunpack.c.l.b16 %v38
    %v62 = vunpack.c.l.b16 %v39
    %v63 = vunpack.c.l.b16 %v40
    %v64 = vunpack.c.l.b16 %v41
    %v65 = vunpack.c.l.b16 %v42
    %v66 = vunpack.c.l.b16 %v43
    %v67 = vunpack.c.l.b16 %v44
    %v68 = vunpack.c.l.b16 %v45
    %v69 = vpack.c.b16 %v61, %v60
    %v70 = vpack.c.b16 %v63, %v62
    %v71 = vpack.c.b16 %v65, %v64
    %v72 = vpack.c.b16 %v67, %v66
    %v73 = vpack.c.b16 %v68, %v68
    %vm78 = vcmask 539648
    %v80 = vsel %vm78, %v50, 0
    %vm82 = vcmask 1040384
    %v84 = vsel %vm82, %v73, 0
    %86 = vmatprep.subr.bf16.mxu0 0
    %87 = vmatpush1.bf16.msra.mxu0 %v69
    %88 = vmatprep.subr.bf16.mxu0 0
    %89 = vmatpush1.bf16.msra.mxu0 %v70
    %90 = vmatprep.subr.bf16.mxu0 0
    %91 = vmatpush1.bf16.msra.mxu0 %v71
    %92 = vmatprep.subr.bf16.mxu0 0
    %93 = vmatpush1.bf16.msra.mxu0 %v72
    %94 = vmatprep.subr.bf16.mxu0 0
    %95 = vmatpush1.bf16.msra.mxu0 %v84
    %96 = vmatprep.subr.bf16.mxu0 0
    %97 = vmatpush1.bf16.msra.mxu0 0
    %98 = vmatprep.subr.bf16.mxu0 0
    %99 = vmatpush1.bf16.msra.mxu0 0
    %100 = vmatprep.subr.bf16.mxu0 0
    %101 = vmatpush1.bf16.msra.mxu0 0
    %102 = vmatprep.subr.bf16.mxu0 0
    %103 = vmatpush1.bf16.msra.mxu0 0
    %104 = vmatprep.subr.bf16.mxu0 0
    %105 = vmatpush1.bf16.msra.mxu0 0
    %106 = vmatprep.subr.bf16.mxu0 0
    %107 = vmatpush1.bf16.msra.mxu0 0
    %108 = vmatprep.subr.bf16.mxu0 0
    %109 = vmatpush1.bf16.msra.mxu0 0
    %110 = vmatprep.subr.bf16.mxu0 0
    %111 = vmatpush1.bf16.msra.mxu0 0
    %112 = vmatprep.subr.bf16.mxu0 0
    %113 = vmatpush1.bf16.msra.mxu0 0
    %114 = vmatprep.subr.bf16.mxu0 0
    %115 = vmatpush1.bf16.msra.mxu0 0
    %116 = vmatprep.subr.bf16.mxu0 0
    %117 = vmatpush1.bf16.msra.mxu0 0
    %118 = vmatprep.mubr.bf16.mxu0 0
    %119 = vmatmul.mubr.bf16.gmra.mrb[0].mxu0 %v80
    %v120 = vpop.f32.mrb[0].mxu0
    %v121 = vadd.f32 0.0, %v120
    %v122 = vpop.f32.mrb[0].mxu0
    %v123 = vpop.f32.mrb[0].mxu0
    %v124 = vadd.f32 0.0, %v123
    %v125 = vpop.f32.mrb[0].mxu0
    %126 = vdwg.mxu0
    %vm127 = vcmask 130048
    %v128 = vsel %vm127, %v121, -inf
    %129 = vmax.xlane.f32.xlu0 %v128
    %v130 = vpop.xlane.xlu0 %129
    %v131 = vsel %vm127, %v124, -inf
    %132 = vmax.xlane.f32.xlu0 %v131
    %v133 = vpop.xlane.xlu0 %132
    %v134 = vld [vmem:[#allocation2] sm:$0xff]
    %v135 = vld [vmem:[#allocation2 + $0x8] sm:$0xff]
    %v136 = vmax.f32 %v134, %v130
    %v137 = vmax.f32 %v135, %v133
    %v138 = vld [vmem:[#allocation3] sm:$0xff]
    %v139 = vld [vmem:[#allocation3 + $0x8] sm:$0xff]
    %v140 = vsub.f32 %v134, %v136
    %v141 = vsub.f32 %v135, %v137
    %v142 = vmul.f32 %v140, 1.442695
    %v143 = vpow.pop %v142
    %v144 = vmul.f32 %v141, 1.442695
    %v145 = vpow.pop %v144
    %v146 = vmul.f32 %v138, %v143
    %v147 = vmul.f32 %v139, %v145
    %149 = vset.pattern.permute.xlu0 0
    %150 = vperm.xlu0 %149, %v136
    %v151 = vpop.permute.xlu0 %150
    %154 = vset.pattern.permute.xlu0 0
    %155 = vperm.xlu0 %154, %v137
    %v156 = vpop.permute.xlu0 %155
    %v158 = vsub.f32 %v121, %v151
    %v159 = vsub.f32 %v124, %v156
    %v160 = vmul.f32 %v158, 1.442695
    %v161 = vpow.pop %v160
    %v162 = vmul.f32 %v159, 1.442695
    %v163 = vpow.pop %v162
    %v164 = vsel %vm127, %v161, 0.0
    %165 = vadd.xlane.f32.xlu0 %v164
    %v166 = vpop.xlane.xlu0 %165
    %v167 = vsel %vm127, %v163, 0.0
    %168 = vadd.xlane.f32.xlu0 %v167
    %v169 = vpop.xlane.xlu0 %168
    %v170 = vadd.f32 %v146, %v166
    %v171 = vadd.f32 %v147, %v169
    %vm172 = vcmask 7168
    %173 = vst.msk [vmem:[#allocation3] sm:$0xff] %vm172, %v170
    %174 = vst.msk [vmem:[#allocation3 + $0x8] sm:$0xff] %vm172, %v171
    %175 = vst.msk [vmem:[#allocation2] sm:$0xff] %vm172, %v136
    %176 = vst.msk [vmem:[#allocation2 + $0x8] sm:$0xff] %vm172, %v137
    %v177 = vmax.f32 %v128, %v131
    %v178 = vrot.slane %v177, 4
    %v179 = vmax.f32 %v177, %v178
    %v180 = vrot.slane %v179, 2
    %v181 = vmax.f32 %v179, %v180
    %v182 = vrot.slane %v181, 1
    %v183 = vmax.f32 %v181, %v182
    %v184 = vld [vmem:[#allocation4] sm:$0x1]
    %v185 = vmax.f32 %v184, %v183
    %v186 = vld [vmem:[#allocation5] sm:$0x1]
    %v187 = vsub.f32 %v184, %v185
    %v188 = vmul.f32 %v187, 1.442695
    %v189 = vpow.pop %v188
    %v190 = vmul.f32 %v186, %v189
    %v192 = vlaneseq
    %v193 = vshrl.u32 %v192, 7
    %v194 = vsub.s32 0, %v193
    %v195 = vrot.slane %v185, %v194
    %v197 = vsub.f32 %v121, %v195
    %v198 = vsub.f32 %v124, %v195
    %v199 = vmul.f32 %v197, 1.442695
    %v200 = vpow.pop %v199
    %v201 = vmul.f32 %v198, 1.442695
    %v202 = vpow.pop %v201
    %v203 = vsel %vm127, %v200, 0.0
    %v204 = vsel %vm127, %v202, 0.0
    %v205 = vadd.f32 %v203, %v204
    %v206 = vrot.slane %v205, 4
    %v207 = vadd.f32 %v205, %v206
    %v208 = vrot.slane %v207, 2
    %v209 = vadd.f32 %v207, %v208
    %v210 = vrot.slane %v209, 1
    %v211 = vadd.f32 %v209, %v210
    %v212 = vadd.f32 %v190, %v211
    %vm213 = vcmask 122880
    %214 = vst.msk [vmem:[#allocation5] sm:$0x1] %vm213, %v212
    %215 = vst.msk [vmem:[#allocation4] sm:$0x1] %vm213, %v185
    %p216 = scmp.ge.s32.totalorder 0, 0
    %s217 = sadd.s32 0, 1
    %p218 = scmp.lt.s32.totalorder 0, %s217
    %p219 = pnand %p216, %p218
    %p220 = pneg %p219
    // Predicated region
    $region22: #{tpu_custom_call.1} parent=1 // pred_check
      _
    $region23: #{tpu_custom_call.1} parent=1 // pred_check_branch
      %222 = sbr.rel (%p219) target = $region25
    $region24: #{tpu_custom_call.1} parent=1 // pred_region
      %s223 = ssub.s32 0, 0
      %s224 = smul.u32 %s223, 16
      %v225 = vlaneseq
      %v226 = vshrl.u32 %v225, 7
      %v227 = vadd.s32 %v226, 8
      %v228 = vlaneseq
      %v229 = vand.u32 %v228, 127
      %v230 = vstv %s224
      %v231 = vadd.s32 %v229, %v230
      %vm232 = vcmp.eq.s32.totalorder %v226, %v231
      %vm233 = vcmp.eq.s32.totalorder %v227, %v231
      %s234 = smul.u32 0, 16
      %v235 = vstv %s234
      %v236 = vadd.s32 %v235, %v226
      %v237 = vadd.s32 %v235, %v227
      %vm238 = vcmp.lt.s32.totalorder %v236, 12
      %vm239 = vcmp.lt.s32.totalorder %v237, 12
      %vm240 = vmand %vm232, %vm238
      %vm241 = vmand %vm233, %vm239
      %v242 = vsel %vm240, %v121, 0.0
      %v243 = vsel %vm241, %v124, 0.0
      %s244 = sld [smem:[#allocation6]]
      %v245 = vsel %vm127, %v242, 0.0
      %v246 = vsel %vm127, %v243, 0.0
      %v247 = vadd.f32 %v245, %v246
      %248 = vadd.xlane.f32.xlu0 %v247
      %v249 = vpop.xlane.xlu0 %248
      %v250 = vrot.slane %v249, 4
      %v251 = vadd.f32 %v249, %v250
      %v252 = vrot.slane %v251, 2
      %v253 = vadd.f32 %v251, %v252
      %v254 = vrot.slane %v253, 1
      %v255 = vadd.f32 %v253, %v254
      %s256 = vtos %v255
      %s257 = smul.f32 %s256, 2.0
      %s258 = ssub.f32 %s244, %s257
      %s259 = scalar_lea.smem [#allocation6], 0
      %260 = sst [smem:[%s259]] %s258
    $region25: #{tpu_custom_call.1} parent=1 // pred_fallthru
      _
    // Predicated region
    $region26: #{tpu_custom_call.1} parent=1 // pred_check
      %p261 = pneg %p14
    $region27: #{tpu_custom_call.1} parent=1 // pred_check_branch
      %263 = sbr.rel (%p261) target = $region29
    $region28: #{tpu_custom_call.1} parent=1 // pred_region
      %v264 = vld [vmem:[#allocation2] sm:$0xff]
      %v265 = vld [vmem:[#allocation2 + $0x8] sm:$0xff]
      %v266 = vld [vmem:[#allocation3] sm:$0xff]
      %v267 = vld [vmem:[#allocation3 + $0x8] sm:$0xff]
      %v268 = vlog2.pop %v266
      %v269 = vmul.f32 %v268, 0.6931472
      %v270 = vlog2.pop %v267
      %v271 = vmul.f32 %v270, 0.6931472
      %v272 = vadd.f32 %v264, %v269
      %v273 = vadd.f32 %v265, %v271
      %s274 = smul.u32 0, 16
      %v275 = vlaneseq
      %v276 = vshrl.u32 %v275, 7
      %v277 = vadd.s32 %v276, 8
      %v278 = vstv %s274
      %v279 = vadd.s32 %v278, %v276
      %v280 = vadd.s32 %v278, %v277
      %vm281 = vcmp.lt.s32.totalorder %v279, 12
      %vm282 = vcmp.lt.s32.totalorder %v280, 12
      %v283 = vsel %vm281, %v272, 0.0
      %v284 = vsel %vm282, %v273, 0.0
      %s285 = sld [smem:[#allocation6]]
      %v286 = vsel %vm172, %v283, 0.0
      %v287 = vsel %vm172, %v284, 0.0
      %v288 = vadd.f32 %v286, %v287
      %289 = vadd.xlane.f32.xlu0 %v288
      %v290 = vpop.xlane.xlu0 %289
      %v291 = vrot.slane %v290, 4
      %v292 = vadd.f32 %v290, %v291
      %v293 = vrot.slane %v292, 2
      %v294 = vadd.f32 %v292, %v293
      %v295 = vrot.slane %v294, 1
      %v296 = vadd.f32 %v294, %v295
      %s297 = vtos %v296
      %s298 = sadd.f32 %s285, %s297
      %s299 = scalar_lea.smem [#allocation6], 0
      %300 = sst [smem:[%s299]] %s298
    $region29: #{tpu_custom_call.1} parent=1 // pred_fallthru
      _
    // Predicated region
    $region30: #{tpu_custom_call.1} parent=1 // pred_check
      %p301 = pneg %p13
    $region31: #{tpu_custom_call.1} parent=1 // pred_check_branch
      %303 = sbr.rel (%p301) target = $region33
    $region32: #{tpu_custom_call.1} parent=1 // pred_region
      %v304 = vld [vmem:[#allocation4] sm:$0x1]
      %v305 = vld [vmem:[#allocation5] sm:$0x1]
      %v306 = vlog2.pop %v305
      %v307 = vmul.f32 %v306, 0.6931472
      %v308 = vadd.f32 %v304, %v307
      %s309 = smul.u32 0, 16
      %v310 = vlaneseq
      %v311 = vand.u32 %v310, 127
      %v312 = vstv %s309
      %v313 = vadd.s32 %v312, %v311
      %vm314 = vcmp.lt.s32.totalorder %v313, 12
      %v315 = vsel %vm314, %v308, 0.0
      %s316 = sld [smem:[#allocation6]]
      %v317 = vsel %vm213, %v315, 0.0
      %318 = vadd.xlane.f32.xlu0 %v317
      %v319 = vpop.xlane.xlu0 %318
      %v320 = vrot.slane %v319, 4
      %v321 = vadd.f32 %v319, %v320
      %v322 = vrot.slane %v321, 2
      %v323 = vadd.f32 %v321, %v322
      %v324 = vrot.slane %v323, 1
      %v325 = vadd.f32 %v323, %v324
      %s326 = vtos %v325
      %s327 = sadd.f32 %s316, %s326
      %s328 = scalar_lea.smem [#allocation6], 0
      %329 = sst [smem:[%s328]] %s327
    $region33: #{tpu_custom_call.1} parent=1 // pred_fallthru
      _
    // Predicated region
    $region34: #{tpu_custom_call.1} parent=1 // pred_check
      _
    $region35: #{tpu_custom_call.1} parent=1 // pred_check_branch
      %331 = sbr.rel (%p15) target = $region37
    $region36: #{tpu_custom_call.1} parent=1 // pred_region
      %s332 = sld [smem:[#allocation6]]
      %s333 = smul.f32 %s332, 0.041666668
      %s334 = scalar_lea.smem [#allocation7], 0
      %335 = sst [smem:[%s334]] %s333
    $region37: #{tpu_custom_call.1} parent=1 // pred_fallthru
      _
    // Predicated region
    $region38: #{tpu_custom_call.1} parent=1 // pred_check
      _
    $region39: #{tpu_custom_call.1} parent=1 // pred_check_branch
      %337 = sbr.rel (0) target = $region41
    $region40: #{tpu_custom_call.1} parent=1 // pred_region
      %s339 = ssub.s32 16, 16
      %340 = vsyncadd [#allocation8], %s339
      %343 = dma.smem_to_hbm [#allocation7], 16, %s2, [#allocation8]
    $region41: #{tpu_custom_call.1} parent=1 // pred_fallthru
      _
    // Predicated region
    $region42: #{tpu_custom_call.1} parent=1 // pred_check
      _
    $region43: #{tpu_custom_call.1} parent=1 // pred_check_branch
      %345 = sbr.rel (0) target = $region45
    $region44: #{tpu_custom_call.1} parent=1 // pred_region
      %346 = dma.done [#allocation8], 16
    $region45: #{tpu_custom_call.1} parent=1 // pred_fallthru
      _
    %347 = sfence
    %348 = vsyncpa [#allocation8], 1

</llo_original>
